<compile_context>
chip_gen: v6e
topology: v6e:2x2x1
jax: 0.10.0
libtpu: 0.0.40
codegen_flags: <defaults>
</compile_context>

<pallas_src>
import jax
import jax.numpy as jnp
from jax import lax
from jax.experimental import pallas as pl
from jax.experimental.pallas import tpu as pltpu


def _round_up(x, m):
    return (x + m - 1) // m * m


def _pick_time_chunk(t, b_pad, h_pad):
    # Keep Tc >= 8 (amortize ~0.35us per grid step) but cap the double-buffered
    # GI(bf16) + out(f32) block footprint so pipelining keeps headroom on
    # v7x (64 MiB physical / 32 MiB default scoped) and v5e (16 MiB default scoped).
    per_step_bytes = b_pad * (3 * h_pad * 2 + h_pad * 4)
    tc = 32
    while tc > 8 and tc * per_step_bytes > (4 << 20):
        tc //= 2
    return min(tc, _round_up(max(t, 1), 8))


def _pick_row_block(rows):
    # rows is always a multiple of 8 (in fact of Tc*Bp). Largest divisor <= 512
    # keeps pass-1 blocks double-buffered without blowing scoped VMEM.
    for rb in (512, 384, 256, 128, 64, 32, 16, 8):
        if rows % rb == 0:
            return rb
    return rows


# ---------------------------------------------------------------------------
# Pass 1: GI = relu(x) @ W_ih^T + b_ih for ALL timesteps, tiled over row blocks
# ---------------------------------------------------------------------------
def _input_proj_kernel(x_ref, w_ref, b_ref, gi_ref):
    # x_ref: [Rb, E] bf16 (pre-ReLU embeddings), w_ref: [E, 3*Hp] bf16,
    # b_ref: [1, 3*Hp] f32, gi_ref: [Rb, 3*Hp] bf16
    x = jnp.maximum(x_ref[...], 0)                                   # F.relu (bf16, VPU)
    acc = jnp.dot(x, w_ref[...], preferred_element_type=jnp.float32)  # MXU, f32 acc
    gi_ref[...] = (acc + b_ref[...]).astype(jnp.bfloat16)            # bf16 writeback


def _input_projection(x2d_bf16, w_ih_bf16, b_ih_f32):
    rows, e = x2d_bf16.shape
    g = w_ih_bf16.shape[1]
    rb = _pick_row_block(rows)
    return pl.pallas_call(
        _input_proj_kernel,
        out_shape=jax.ShapeDtypeStruct((rows, g), jnp.bfloat16),
        grid_spec=pltpu.PrefetchScalarGridSpec(
            num_scalar_prefetch=0,
            grid=(rows // rb,),
            in_specs=[
                pl.BlockSpec((rb, e), lambda r: (r, 0)),
                pl.BlockSpec((e, g), lambda r: (0, 0),
                             pipeline_mode=pl.Buffered(1)),   # resident weight
                pl.BlockSpec((1, g), lambda r: (0, 0),
                             pipeline_mode=pl.Buffered(1)),   # resident bias
            ],
            out_specs=pl.BlockSpec((rb, g), lambda r: (r, 0)),
        ),
        compiler_params=pltpu.CompilerParams(
            dimension_semantics=("parallel",),   # shards the GEMM across 2 TCs on v7x
        ),
    )(x2d_bf16, w_ih_bf16, b_ih_f32)


# ---------------------------------------------------------------------------
# Pass 2: serial GRU recurrence (only h @ W_hh^T + f32 gate math per step)
# ---------------------------------------------------------------------------
def _gru_recurrent_kernel(gi_ref, h0_ref, whh_ref, bhh_ref, out_ref, h_scratch):
    # gi_ref:  (Tc, B_pad, 3*H_pad) bf16  precomputed relu(x) @ W_ih^T + b_ih
    # h0_ref:  (B_pad, H_pad)       f32   initial hidden (read once at chunk 0)
    # whh_ref: (H_pad, 3*H_pad)     bf16  W_hh^T, gate-major padded (pad rows zero)
    # bhh_ref: (1, 3*H_pad)         f32
    # out_ref: (Tc, B_pad, H_pad)   f32   per-step hidden states (lane-dense tiles)
    # h_scratch: VMEM (B_pad, H_pad) f32  hidden-state carry across time chunks
    @pl.when(pl.program_id(0) == 0)
    def _():
        h_scratch[...] = h0_ref[...]

    hp = h_scratch.shape[-1]
    tc = gi_ref.shape[0]
    whh = whh_ref[...]          # hoisted loads (constant across the loop)
    bhh = bhh_ref[...]

    def step(t, h):
        gi = gi_ref[t].astype(jnp.float32)                       # [B_pad, 3*H_pad]
        gh = jnp.dot(h.astype(jnp.bfloat16), whh,
                     preferred_element_type=jnp.float32) + bhh   # [B_pad, 3*H_pad]
        # Gate slices are lane-aligned (multiples of H_pad=128) -> free views.
        r = jax.nn.sigmoid(gi[:, :hp] + gh[:, :hp])              # f32 gate math
        z = jax.nn.sigmoid(gi[:, hp:2 * hp] + gh[:, hp:2 * hp])
        n = jnp.tanh(gi[:, 2 * hp:] + r * gh[:, 2 * hp:])
        h_new = (1.0 - z) * n + z * h                            # PyTorch GRU update
        out_ref[t] = h_new
        return h_new

    # Visible loop (bounded live ranges, no 32-deep vreg pile-up) with unrolling
    # so the LLO scheduler can still hide latency inside the short body.
    h_scratch[...] = lax.fori_loop(0, tc, step, h_scratch[...], unroll=True)


def gru_forward(gi_tbg, h0_pad, whh_bf16, bhh_f32, tc):
    """gi_tbg: [T_pad, B_pad, 3*H_pad] bf16. Returns out_pad [T_pad, B_pad, H_pad] f32."""
    t_pad, b_pad, g = gi_tbg.shape
    h_pad = g // 3
    return pl.pallas_call(
        _gru_recurrent_kernel,
        out_shape=jax.ShapeDtypeStruct((t_pad, b_pad, h_pad), jnp.float32),
        grid_spec=pltpu.PrefetchScalarGridSpec(
            num_scalar_prefetch=0,
            grid=(t_pad // tc,),
            in_specs=[
                pl.BlockSpec((tc, b_pad, g), lambda c: (c, 0, 0)),      # GI time chunk
                pl.BlockSpec((b_pad, h_pad), lambda c: (0, 0),
                             pipeline_mode=pl.Buffered(1)),             # h0 (resident)
                pl.BlockSpec((h_pad, g), lambda c: (0, 0),
                             pipeline_mode=pl.Buffered(1)),             # W_hh^T (resident)
                pl.BlockSpec((1, g), lambda c: (0, 0),
                             pipeline_mode=pl.Buffered(1)),             # b_hh (resident)
            ],
            out_specs=pl.BlockSpec((tc, b_pad, h_pad), lambda c: (c, 0, 0)),
            scratch_shapes=[pltpu.VMEM((b_pad, h_pad), jnp.float32)],
        ),
        compiler_params=pltpu.CompilerParams(
            dimension_semantics=("arbitrary",),   # recurrence is serial in time
        ),
    )(gi_tbg, h0_pad, whh_bf16, bhh_f32)


class DecoderRNNPallas:
    def __init__(self, vocab_size, embed_size, hidden_size, key):
        self.hidden_size = hidden_size
        k = jax.random.split(key, 7)
        s = 1.0 / jnp.sqrt(hidden_size)
        # nn.Embedding: N(0, 1)
        self.embedding = jax.random.normal(k[0], (vocab_size, embed_size), jnp.float32)
        # nn.GRU params: U(-1/sqrt(H), 1/sqrt(H)), gate order (r, z, n)
        self.w_ih = jax.random.uniform(k[1], (3 * hidden_size, embed_size),
                                       jnp.float32, -s, s)
        self.w_hh = jax.random.uniform(k[2], (3 * hidden_size, hidden_size),
                                       jnp.float32, -s, s)
        self.b_ih = jax.random.uniform(k[3], (3 * hidden_size,), jnp.float32, -s, s)
        self.b_hh = jax.random.uniform(k[4], (3 * hidden_size,), jnp.float32, -s, s)
        # nn.Linear(hidden_size, 1) — defined in __init__ but unused in forward.
        self.fc_w = jax.random.uniform(k[5], (1, hidden_size), jnp.float32, -s, s)
        self.fc_b = jax.random.uniform(k[6], (1,), jnp.float32, -s, s)

        # --- padded, gate-major (lane-aligned) parameter layouts -------------------
        H = hidden_size
        Hp = _round_up(H, 128)
        self._H_pad = Hp

        # bf16 embedding table: gather directly in bf16 (relu commutes with downcast),
        # halving pass-1 input DMA.
        self._embedding_bf16 = self.embedding.astype(jnp.bfloat16)

        def pad_gate_cols(w_t):            # [in, 3H] -> [in, 3*Hp], each gate padded
            i = w_t.shape[0]
            w3 = jnp.pad(w_t.reshape(i, 3, H), ((0, 0), (0, 0), (0, Hp - H)))
            return w3.reshape(i, 3 * Hp)

        wih_t = pad_gate_cols(self.w_ih.T)                        # [E, 3*Hp]
        whh_t = pad_gate_cols(self.w_hh.T)                        # [H, 3*Hp]
        whh_t = jnp.pad(whh_t, ((0, Hp - H), (0, 0)))             # [Hp, 3*Hp], zero rows
        self._wih_bf16 = wih_t.astype(jnp.bfloat16)               # bf16 MXU operands
        self._whh_bf16 = whh_t.astype(jnp.bfloat16)
        self._bih_pad = jnp.pad(self.b_ih.reshape(3, H),
                                ((0, 0), (0, Hp - H))).reshape(1, 3 * Hp)
        self._bhh_pad = jnp.pad(self.b_hh.reshape(3, H),
                                ((0, 0), (0, Hp - H))).reshape(1, 3 * Hp)

    def __call__(self, token_ids, hidden):
        # token_ids: [B, T] int32; hidden: [1, B, H]
        B, T = token_ids.shape
        H, Hp = self.hidden_size, self._H_pad
        Bp = _round_up(B, 8)                         # f32 sublane alignment
        E = self.embedding.shape[1]

        tc = _pick_time_chunk(T, Bp, Hp)
        T_pad = _round_up(T, tc)                     # keep Tc >= 8; pad time, drop later

        # Time-major bf16 embedding gather (fuses away the [B,T,E]->[T,B,E] transpose).
        emb_tbe = self._embedding_bf16[token_ids.T]                              # [T, B, E]
        emb_tbe = jnp.pad(emb_tbe, ((0, T_pad - T), (0, Bp - B), (0, 0)))        # [T_pad, Bp, E]

        # Pass 1: relu + input projection for all timesteps, row-tiled GEMM.
        gi = _input_projection(emb_tbe.reshape(T_pad * Bp, E),
                               self._wih_bf16, self._bih_pad)
        gi = gi.reshape(T_pad, Bp, 3 * Hp)

        # Pass 2: serial GRU recurrence.
        h0_pad = jnp.pad(hidden[0], ((0, Bp - B), (0, Hp - H)))                  # [Bp, Hp]
        out_pad = gru_forward(gi, h0_pad, self._whh_bf16, self._bhh_pad, tc)

        out = out_pad[:T, :B, :H]                      # strip time/batch/hidden padding
        output = jnp.transpose(out, (1, 0, 2))         # [B, T, H] (batch_first)
        h_last = out[T - 1][None]                      # [1, B, H] == GRU final hidden
        return output, h_last


if __name__ == "__main__":
    vocab_size, embed_size, hidden_size = 50, 32, 32
    batch, seq = 2, 8

    key = jax.random.PRNGKey(0)
    k_param, k_ids, k_h = jax.random.split(key, 3)

    model = DecoderRNNPallas(vocab_size, embed_size, hidden_size, k_param)

    token_ids = jax.random.randint(k_ids, (batch, seq), 0, vocab_size, dtype=jnp.int32)
    hidden0 = jax.random.normal(k_h, (1, batch, hidden_size), jnp.float32)

    output, hidden = model(token_ids, hidden0)
    jax.block_until_ready((output, hidden))

    assert output.shape == (batch, seq, hidden_size)
    assert hidden.shape == (1, batch, hidden_size)
    print("KERNEL_OK")
</pallas_src>

<mosaic_0001>
module attributes {stable_mosaic.version = 11 : i64} {
  func.func @_input_proj_kernel(%arg0: i32, %arg1: memref<64x32xbf16, #tpu.memory_space<vmem>>, %arg2: memref<32x384xbf16, #tpu.memory_space<vmem>>, %arg3: memref<1x384xf32, #tpu.memory_space<vmem>>, %arg4: memref<64x384xbf16, #tpu.memory_space<vmem>>) attributes {dimension_semantics = [#tpu.dimension_semantics<parallel>], iteration_bounds = array<i64: 1>, scalar_prefetch = 0 : i64, scratch_operands = 0 : i64, tpu.core_type = #tpu.core_type<tc>, window_params = [{transform_indices = @transform_0, window_bounds = array<i64: 64, 32>}, {pipeline_mode = #tpu.pipeline_mode<synchronous>, transform_indices = @transform_1, window_bounds = array<i64: 32, 384>}, {pipeline_mode = #tpu.pipeline_mode<synchronous>, transform_indices = @transform_2, window_bounds = array<i64: 1, 384>}, {transform_indices = @transform_3, window_bounds = array<i64: 64, 384>}]} {
    %c0 = arith.constant 0 : index
    %c0_0 = arith.constant 0 : index
    %0 = vector.load %arg1[%c0, %c0_0] : memref<64x32xbf16, #tpu.memory_space<vmem>>, vector<64x32xbf16>
    %cst = arith.constant 0.000000e+00 : bf16
    %1 = vector.broadcast %cst : bf16 to vector<64x32xbf16>
    %2 = arith.maximumf %0, %1 : vector<64x32xbf16>
    %c0_1 = arith.constant 0 : index
    %c0_2 = arith.constant 0 : index
    %3 = vector.load %arg2[%c0_1, %c0_2] : memref<32x384xbf16, #tpu.memory_space<vmem>>, vector<32x384xbf16>
    %cst_3 = arith.constant dense<0.000000e+00> : vector<64x384xf32>
    %4 = tpu.matmul %2, %3, %cst_3 {dimension_numbers = #tpu.dot_dimension_numbers<[1], [0], [0], [1], [0, 0, 1, 1], [], []>} : vector<64x32xbf16>, vector<32x384xbf16>, vector<64x384xf32> -> vector<64x384xf32>
    %c0_4 = arith.constant 0 : index
    %c0_5 = arith.constant 0 : index
    %5 = vector.load %arg3[%c0_4, %c0_5] : memref<1x384xf32, #tpu.memory_space<vmem>>, vector<1x384xf32>
    %6 = vector.broadcast %5 : vector<1x384xf32> to vector<64x384xf32>
    %7 = arith.addf %4, %6 : vector<64x384xf32>
    %8 = arith.truncf %7 : vector<64x384xf32> to vector<64x384xbf16>
    %c0_6 = arith.constant 0 : index
    %c0_7 = arith.constant 0 : index
    %9 = vector.load %arg4[%c0_6, %c0_7] : memref<64x384xbf16, #tpu.memory_space<vmem>>, vector<64x384xbf16>
    tpu.vector_store %arg4[%c0_6, %c0_7], %8 {strides = array<i32>} : memref<64x384xbf16, #tpu.memory_space<vmem>>, vector<64x384xbf16>,
    return
  }
  func.func @transform_0(%arg0: i32) -> (i32, i32) {
    %c0_i32 = arith.constant 0 : i32
    %c0_i32_0 = arith.constant 0 : i32
    return %arg0, %c0_i32 : i32, i32
  }
  func.func @transform_1(%arg0: i32) -> (i32, i32) {
    %c0_i32 = arith.constant 0 : i32
    %c0_i32_0 = arith.constant 0 : i32
    %c0_i32_1 = arith.constant 0 : i32
    return %c0_i32, %c0_i32_0 : i32, i32
  }
  func.func @transform_2(%arg0: i32) -> (i32, i32) {
    %c0_i32 = arith.constant 0 : i32
    %c0_i32_0 = arith.constant 0 : i32
    %c0_i32_1 = arith.constant 0 : i32
    return %c0_i32, %c0_i32_0 : i32, i32
  }
  func.func @transform_3(%arg0: i32) -> (i32, i32) {
    %c0_i32 = arith.constant 0 : i32
    %c0_i32_0 = arith.constant 0 : i32
    return %arg0, %c0_i32 : i32, i32
  }
}

</mosaic_0001>

<llo_original>
// kernel: tpu_custom_call.1
$region0: #{tpu_custom_call.1}
  #allocation0 [shape = 'u32[]', space=smem, size = 0x4, offset = 0x4, fixed_abs, tag = 'smem constant byte address 0x4 - core index']
  #allocation1 [shape = 'u32[144,128]{1,0:T(1,128)}', space=vmem, size = 0x12000, scoped, tag = 'internal scratch']
  %s0 = inlined_call_operand.vmem [shape: bf16[64,32], index: 0, kind: input, shape index: {}]
  %s1 = inlined_call_operand.vmem [shape: bf16[32,384], index: 1, kind: input, shape index: {}]
  %s2 = inlined_call_operand.vmem [shape: f32[1,384], index: 2, kind: input, shape index: {}]
  %s3 = inlined_call_operand.hbm [shape: bf16[64,384], index: 3, kind: output, shape index: {}]
  %s4 = sld [smem:[#allocation0]]
  $region22: #{tpu_custom_call.1} parent=0
    _
  %s6 = ssub.s32 1, %s4
  %s7 = scalar_select 0, %s6, %s4
  $region1: #{tpu_custom_call.1} parent=0
    #allocation2 [shape = 'u8[49152]{0}', space=vmem, size = 0xc000, scoped, tag = 'output window, operand 0, single buffered']
    #allocation3 [shape = 's32[1]{0}', space=sflag, size = 0x4, scoped, tag = 'scoped memory for tpu_custom_call.1']
    %8 = vsyncpa [#allocation3], 0
    // Predicated region
    $region2: #{tpu_custom_call.1} parent=1 // pred_check
      _
    $region3: #{tpu_custom_call.1} parent=1 // pred_check_branch
      %10 = sbr.rel (0) target = $region5
    $region4: #{tpu_custom_call.1} parent=1 // pred_region
      _
    $region5: #{tpu_custom_call.1} parent=1 // pred_fallthru
      _
    // Predicated region
    $region6: #{tpu_custom_call.1} parent=1 // pred_check
      _
    $region7: #{tpu_custom_call.1} parent=1 // pred_check_branch
      %12 = sbr.rel (0) target = $region9
    $region8: #{tpu_custom_call.1} parent=1 // pred_region
      _
    $region9: #{tpu_custom_call.1} parent=1 // pred_fallthru
      _
    // Predicated region
    $region10: #{tpu_custom_call.1} parent=1 // pred_check
      _
    $region11: #{tpu_custom_call.1} parent=1 // pred_check_branch
      %14 = sbr.rel (0) target = $region13
    $region12: #{tpu_custom_call.1} parent=1 // pred_region
      _
    $region13: #{tpu_custom_call.1} parent=1 // pred_fallthru
      _
    %v16 = vld [vmem:[%s0] sm:$0xf]
    %v17 = vld [vmem:[%s0 + $0x4] sm:$0xf]
    %v18 = vld [vmem:[%s0 + $0x8] sm:$0xf]
    %v19 = vld [vmem:[%s0 + $0xc] sm:$0xf]
    %v20 = vld [vmem:[%s0 + $0x10] sm:$0xf]
    %v21 = vld [vmem:[%s0 + $0x14] sm:$0xf]
    %v22 = vld [vmem:[%s0 + $0x18] sm:$0xf]
    %v23 = vld [vmem:[%s0 + $0x1c] sm:$0xf]
    %v24 = vmax.bf16 %v16, 0
    %v25 = vmax.bf16 %v17, 0
    %v26 = vmax.bf16 %v18, 0
    %v27 = vmax.bf16 %v19, 0
    %v28 = vmax.bf16 %v20, 0
    %v29 = vmax.bf16 %v21, 0
    %v30 = vmax.bf16 %v22, 0
    %v31 = vmax.bf16 %v23, 0
    %v32 = vld [vmem:[%s1] sm:$0xff]
    %v33 = vld [vmem:[%s1 + $0x8] sm:$0xf]
    %v34 = vld [vmem:[%s1 + $0xc] sm:$0xff]
    %v35 = vld [vmem:[%s1 + $0x14] sm:$0xf]
    %v36 = vld [vmem:[%s1 + $0x18] sm:$0xff]
    %v37 = vld [vmem:[%s1 + $0x20] sm:$0xf]
    %v38 = vld [vmem:[%s1 + $0x24] sm:$0xff]
    %v39 = vld [vmem:[%s1 + $0x2c] sm:$0xf]
    %v40 = vld [vmem:[%s2] sm:$0x7]
    %v42 = vlaneseq
    %v43 = vshrl.u32 %v42, 7
    %v44 = vsub.s32 0, %v43
    %v45 = vrot.slane %v40, %v44
    %v46 = vlaneseq
    %v47 = vshrl.u32 %v46, 7
    %v48 = vsub.s32 1, %v47
    %v49 = vrot.slane %v40, %v48
    %v50 = vlaneseq
    %v51 = vshrl.u32 %v50, 7
    %v52 = vsub.s32 2, %v51
    %v53 = vrot.slane %v40, %v52
    %v65 = vunpack.c.l.b16 %v24
    %v66 = vunpack.c.l.b16 %v25
    %v67 = vunpack.c.l.b16 %v26
    %v68 = vunpack.c.l.b16 %v27
    %v69 = vunpack.c.l.b16 %v28
    %v70 = vunpack.c.l.b16 %v29
    %v71 = vunpack.c.l.b16 %v30
    %v72 = vunpack.c.l.b16 %v31
    %v73 = vpack.c.b16 %v66, %v65
    %v74 = vpack.c.b16 %v68, %v67
    %v75 = vpack.c.b16 %v70, %v69
    %v76 = vpack.c.b16 %v72, %v71
    %v85 = vunpack.c.l.b16 %v32
    %v86 = vunpack.c.h.b16 %v32
    %v87 = vunpack.c.l.b16 %v33
    %v88 = vunpack.c.l.b16 %v34
    %v89 = vunpack.c.h.b16 %v34
    %v90 = vunpack.c.l.b16 %v35
    %v91 = vunpack.c.l.b16 %v36
    %v92 = vunpack.c.h.b16 %v36
    %v93 = vunpack.c.l.b16 %v37
    %v94 = vunpack.c.l.b16 %v38
    %v95 = vunpack.c.h.b16 %v38
    %v96 = vunpack.c.l.b16 %v39
    %v97 = vpack.c.b16 %v88, %v85
    %v98 = vpack.c.b16 %v89, %v86
    %v99 = vpack.c.b16 %v90, %v87
    %v100 = vpack.c.b16 %v94, %v91
    %v101 = vpack.c.b16 %v95, %v92
    %v102 = vpack.c.b16 %v96, %v93
    %vm109 = vcmask 261120
    %v111 = vsel %vm109, %v73, 0
    %v114 = vsel %vm109, %v74, 0
    %v117 = vsel %vm109, %v75, 0
    %v120 = vsel %vm109, %v76, 0
    %122 = vmatprep.subr.bf16.mxu0 0
    %123 = vmatpush1.bf16.msra.mxu0 0
    %124 = vmatprep.subr.bf16.mxu0 0
    %125 = vmatpush1.bf16.msra.mxu0 0
    %126 = vmatprep.subr.bf16.mxu0 0
    %127 = vmatpush1.bf16.msra.mxu0 0
    %128 = vmatprep.subr.bf16.mxu0 0
    %129 = vmatpush1.bf16.msra.mxu0 0
    %130 = vmatprep.subr.bf16.mxu0 0
    %131 = vmatpush1.bf16.msra.mxu0 0
    %132 = vmatprep.subr.bf16.mxu0 0
    %133 = vmatpush1.bf16.msra.mxu0 0
    %134 = vmatprep.subr.bf16.mxu0 %v101
    %135 = vmatpush1.bf16.msra.mxu0 %v100
    %136 = vmatprep.subr.bf16.mxu0 %v98
    %137 = vmatpush1.bf16.msra.mxu0 %v97
    %138 = vmatprep.subr.bf16.mxu0 0
    %139 = vmatpush2.bf16.msra.mxu0 0
    %140 = vmatprep.subr.bf16.mxu0 0
    %141 = vmatpush2.bf16.msra.mxu0 0
    %142 = vmatprep.subr.bf16.mxu0 0
    %143 = vmatpush2.bf16.msra.mxu0 0
    %144 = vmatprep.subr.bf16.mxu0 0
    %145 = vmatpush2.bf16.msra.mxu0 0
    %146 = vmatprep.subr.bf16.mxu0 0
    %147 = vmatpush2.bf16.msra.mxu0 0
    %148 = vmatprep.subr.bf16.mxu0 0
    %149 = vmatpush2.bf16.msra.mxu0 0
    %150 = vmatprep.subr.bf16.mxu0 0
    %151 = vmatpush2.bf16.msra.mxu0 0
    %152 = vmatprep.subr.bf16.mxu0 0
    %153 = vmatpush2.bf16.msra.mxu0 0
    %154 = vmatprep.mubr.bf16.mxu0 0
    %155 = vmatmul.mubr.bf16.gmra.mxu0 %v111
    %v156 = vpop.f32.mrf.mxu0
    %v157 = vadd.f32 %v45, %v156
    %v158 = vpop.f32.mrf.mxu0
    %v159 = vadd.f32 %v49, %v158
    %v160 = vpop.f32.mrf.mxu0
    %v161 = vadd.f32 %v45, %v160
    %v162 = vpop.f32.mrf.mxu0
    %v163 = vadd.f32 %v49, %v162
    %164 = vmatprep.mubr.bf16.mxu0 0
    %165 = vmatmul.mubr.bf16.gmra.mxu0 %v114
    %v166 = vpop.f32.mrf.mxu0
    %v167 = vadd.f32 %v45, %v166
    %v168 = vpop.f32.mrf.mxu0
    %v169 = vadd.f32 %v49, %v168
    %v170 = vpop.f32.mrf.mxu0
    %v171 = vadd.f32 %v45, %v170
    %v172 = vpop.f32.mrf.mxu0
    %v173 = vadd.f32 %v49, %v172
    %174 = vmatprep.mubr.bf16.mxu0 0
    %175 = vmatmul.mubr.bf16.gmra.mxu0 %v117
    %v176 = vpop.f32.mrf.mxu0
    %v177 = vadd.f32 %v45, %v176
    %v178 = vpop.f32.mrf.mxu0
    %v179 = vadd.f32 %v49, %v178
    %v180 = vpop.f32.mrf.mxu0
    %v181 = vadd.f32 %v45, %v180
    %v182 = vpop.f32.mrf.mxu0
    %v183 = vadd.f32 %v49, %v182
    %184 = vmatprep.mubr.bf16.mxu0 0
    %185 = vmatmul.mubr.bf16.gmra.mxu0 %v120
    %v186 = vpop.f32.mrf.mxu0
    %v187 = vadd.f32 %v45, %v186
    %v188 = vpop.f32.mrf.mxu0
    %v189 = vadd.f32 %v49, %v188
    %v190 = vpop.f32.mrf.mxu0
    %v191 = vadd.f32 %v45, %v190
    %v192 = vpop.f32.mrf.mxu0
    %v193 = vadd.f32 %v49, %v192
    %194 = vdwg.mxu0
    %195 = vmatprep.subr.bf16.mxu0 0
    %196 = vmatpush1.bf16.msra.mxu0 0
    %197 = vmatprep.subr.bf16.mxu0 0
    %198 = vmatpush1.bf16.msra.mxu0 0
    %199 = vmatprep.subr.bf16.mxu0 0
    %200 = vmatpush1.bf16.msra.mxu0 0
    %201 = vmatprep.subr.bf16.mxu0 0
    %202 = vmatpush1.bf16.msra.mxu0 0
    %203 = vmatprep.subr.bf16.mxu0 0
    %204 = vmatpush1.bf16.msra.mxu0 0
    %205 = vmatprep.subr.bf16.mxu0 0
    %206 = vmatpush1.bf16.msra.mxu0 0
    %207 = vmatprep.subr.bf16.mxu0 0
    %208 = vmatpush1.bf16.msra.mxu0 %v102
    %209 = vmatprep.subr.bf16.mxu0 0
    %210 = vmatpush1.bf16.msra.mxu0 %v99
    %211 = vmatprep.subr.bf16.mxu0 0
    %212 = vmatpush2.bf16.msra.mxu0 0
    %213 = vmatprep.subr.bf16.mxu0 0
    %214 = vmatpush2.bf16.msra.mxu0 0
    %215 = vmatprep.subr.bf16.mxu0 0
    %216 = vmatpush2.bf16.msra.mxu0 0
    %217 = vmatprep.subr.bf16.mxu0 0
    %218 = vmatpush2.bf16.msra.mxu0 0
    %219 = vmatprep.subr.bf16.mxu0 0
    %220 = vmatpush2.bf16.msra.mxu0 0
    %221 = vmatprep.subr.bf16.mxu0 0
    %222 = vmatpush2.bf16.msra.mxu0 0
    %223 = vmatprep.subr.bf16.mxu0 0
    %224 = vmatpush2.bf16.msra.mxu0 0
    %225 = vmatprep.subr.bf16.mxu0 0
    %226 = vmatpush2.bf16.msra.mxu0 0
    %227 = vmatprep.mubr.bf16.mxu0 0
    %228 = vmatmul.mubr.bf16.gmra.mxu0 %v111
    %v229 = vpop.f32.mrf.mxu0
    %v230 = vadd.f32 %v53, %v229
    %v231 = vpop.f32.mrf.mxu0
    %v232 = vpop.f32.mrf.mxu0
    %v233 = vadd.f32 %v53, %v232
    %v234 = vpop.f32.mrf.mxu0
    %235 = vmatprep.mubr.bf16.mxu0 0
    %236 = vmatmul.mubr.bf16.gmra.mxu0 %v114
    %v237 = vpop.f32.mrf.mxu0
    %v238 = vadd.f32 %v53, %v237
    %v239 = vpop.f32.mrf.mxu0
    %v240 = vpop.f32.mrf.mxu0
    %v241 = vadd.f32 %v53, %v240
    %v242 = vpop.f32.mrf.mxu0
    %243 = vmatprep.mubr.bf16.mxu0 0
    %244 = vmatmul.mubr.bf16.gmra.mxu0 %v117
    %v245 = vpop.f32.mrf.mxu0
    %v246 = vadd.f32 %v53, %v245
    %v247 = vpop.f32.mrf.mxu0
    %v248 = vpop.f32.mrf.mxu0
    %v249 = vadd.f32 %v53, %v248
    %v250 = vpop.f32.mrf.mxu0
    %251 = vmatprep.mubr.bf16.mxu0 0
    %252 = vmatmul.mubr.bf16.gmra.mxu0 %v120
    %v253 = vpop.f32.mrf.mxu0
    %v254 = vadd.f32 %v53, %v253
    %v255 = vpop.f32.mrf.mxu0
    %v256 = vpop.f32.mrf.mxu0
    %v257 = vadd.f32 %v53, %v256
    %v258 = vpop.f32.mrf.mxu0
    %259 = vdwg.mxu0
    %v260 = vpack.c.bf16 %v161, %v157
    %v261 = vpack.c.bf16 %v163, %v159
    %v262 = vpack.c.bf16 %v233, %v230
    %v263 = vpack.c.bf16 %v171, %v167
    %v264 = vpack.c.bf16 %v173, %v169
    %v265 = vpack.c.bf16 %v241, %v238
    %v266 = vpack.c.bf16 %v181, %v177
    %v267 = vpack.c.bf16 %v183, %v179
    %v268 = vpack.c.bf16 %v249, %v246
    %v269 = vpack.c.bf16 %v191, %v187
    %v270 = vpack.c.bf16 %v193, %v189
    %v271 = vpack.c.bf16 %v257, %v254
    %v284 = vunpack.c.l.b16 %v260
    %v285 = vunpack.c.l.b16 %v261
    %v286 = vunpack.c.l.b16 %v262
    %v287 = vunpack.c.h.b16 %v260
    %v288 = vunpack.c.h.b16 %v261
    %v289 = vunpack.c.h.b16 %v262
    %v290 = vunpack.c.l.b16 %v263
    %v291 = vunpack.c.l.b16 %v264
    %v292 = vunpack.c.l.b16 %v265
    %v293 = vunpack.c.h.b16 %v263
    %v294 = vunpack.c.h.b16 %v264
    %v295 = vunpack.c.h.b16 %v265
    %v296 = vunpack.c.l.b16 %v266
    %v297 = vunpack.c.l.b16 %v267
    %v298 = vunpack.c.l.b16 %v268
    %v299 = vunpack.c.h.b16 %v266
    %v300 = vunpack.c.h.b16 %v267
    %v301 = vunpack.c.h.b16 %v268
    %v302 = vunpack.c.l.b16 %v269
    %v303 = vunpack.c.l.b16 %v270
    %v304 = vunpack.c.l.b16 %v271
    %v305 = vunpack.c.h.b16 %v269
    %v306 = vunpack.c.h.b16 %v270
    %v307 = vunpack.c.h.b16 %v271
    %v308 = vpack.c.b16 %v285, %v284
    %v309 = vpack.c.b16 %v286, %v286
    %v310 = vpack.c.b16 %v288, %v287
    %v311 = vpack.c.b16 %v289, %v289
    %v312 = vpack.c.b16 %v291, %v290
    %v313 = vpack.c.b16 %v292, %v292
    %v314 = vpack.c.b16 %v294, %v293
    %v315 = vpack.c.b16 %v295, %v295
    %v316 = vpack.c.b16 %v297, %v296
    %v317 = vpack.c.b16 %v298, %v298
    %v318 = vpack.c.b16 %v300, %v299
    %v319 = vpack.c.b16 %v301, %v301
    %v320 = vpack.c.b16 %v303, %v302
    %v321 = vpack.c.b16 %v304, %v304
    %v322 = vpack.c.b16 %v306, %v305
    %v323 = vpack.c.b16 %v307, %v307
    %340 = vst [vmem:[#allocation2] sm:$0xff] %v308
    %341 = vst [vmem:[#allocation2 + $0x8] sm:$0xf] %v309
    %342 = vst [vmem:[#allocation2 + $0xc] sm:$0xff] %v310
    %343 = vst [vmem:[#allocation2 + $0x14] sm:$0xf] %v311
    %344 = vst [vmem:[#allocation2 + $0x18] sm:$0xff] %v312
    %345 = vst [vmem:[#allocation2 + $0x20] sm:$0xf] %v313
    %346 = vst [vmem:[#allocation2 + $0x24] sm:$0xff] %v314
    %347 = vst [vmem:[#allocation2 + $0x2c] sm:$0xf] %v315
    %348 = vst [vmem:[#allocation2 + $0x30] sm:$0xff] %v316
    %349 = vst [vmem:[#allocation2 + $0x38] sm:$0xf] %v317
    %350 = vst [vmem:[#allocation2 + $0x3c] sm:$0xff] %v318
    %351 = vst [vmem:[#allocation2 + $0x44] sm:$0xf] %v319
    %352 = vst [vmem:[#allocation2 + $0x48] sm:$0xff] %v320
    %353 = vst [vmem:[#allocation2 + $0x50] sm:$0xf] %v321
    %354 = vst [vmem:[#allocation2 + $0x54] sm:$0xff] %v322
    %355 = vst [vmem:[#allocation2 + $0x5c] sm:$0xf] %v323
    // Predicated region
    $region14: #{tpu_custom_call.1} parent=1 // pred_check
      _
    $region15: #{tpu_custom_call.1} parent=1 // pred_check_branch
      %357 = sbr.rel (0) target = $region17
    $region16: #{tpu_custom_call.1} parent=1 // pred_region
      %s359 = ssub.s32 1536, 1536
      %360 = vsyncadd [#allocation3], %s359
      %s361 = sshll.u32 [#allocation2], 4
      %s362 = int_to_ptr.vmem [resolvable:$true] %s361
      %367 = dma.vmem_to_hbm [thread:$0]  %s362, 1536, %s3, [#allocation3], 192, 192, 12
    $region17: #{tpu_custom_call.1} parent=1 // pred_fallthru
      _
    // Predicated region
    $region18: #{tpu_custom_call.1} parent=1 // pred_check
      _
    $region19: #{tpu_custom_call.1} parent=1 // pred_check_branch
      %369 = sbr.rel (0) target = $region21
    $region20: #{tpu_custom_call.1} parent=1 // pred_region
      %370 = dma.done [#allocation3], 1536
    $region21: #{tpu_custom_call.1} parent=1 // pred_fallthru
      _
    %371 = vsyncpa [#allocation3], 1

</llo_original>
